<compile_context>
chip_gen: v7x
topology: tpu7x:2x2x1
jax: 0.10.0
libtpu: 0.0.40
codegen_flags: <defaults>
</compile_context>

<pallas_src>
import jax
import jax.numpy as jnp
from jax.experimental import pallas as pl
from jax.experimental.pallas import tpu as pltpu

LANES = 128          # vreg lane width (last-dim tile)
SUBLANES = 8         # vreg sublane count (second-to-last-dim tile, f32)
MAX_TILE_ROWS = 4096  # (4096, 128) f32 = 2 MiB per buffer; 2 bufs x (in+out)
                      # = 8 MiB, well under v7x's 32 MiB scoped VMEM default.


def _linreg_composite3_kernel(params_ref, x_ref, o_ref):
    # params_ref: SMEM (scalar-prefetched), shape (2,) f32 -> [W, B] where the
    # three Linear(1,1) layers are pre-folded:  W = w1*w2*w3,
    # B = (b1*w2 + b2)*w3 + b3.
    w = params_ref[0]
    b = params_ref[1]
    o_ref[...] = x_ref[...] * w + b


def linreg_composite3(x, w1, b1, w2, b2, w3, b3):
    """x: (N, 1) float32 (nn.Linear(1,1) input convention). Returns (N, 1)."""
    orig_shape = x.shape
    orig_dtype = x.dtype

    # --- Fold the three affine transforms (done once, in the XLA wrapper). ---
    w1 = jnp.asarray(w1, jnp.float32).reshape(())
    b1 = jnp.asarray(b1, jnp.float32).reshape(())
    w2 = jnp.asarray(w2, jnp.float32).reshape(())
    b2 = jnp.asarray(b2, jnp.float32).reshape(())
    w3 = jnp.asarray(w3, jnp.float32).reshape(())
    b3 = jnp.asarray(b3, jnp.float32).reshape(())
    w_fold = w1 * w2 * w3
    b_fold = (b1 * w2 + b2) * w3 + b3
    params = jnp.stack([w_fold, b_fold])  # (2,) f32 -> SMEM via scalar prefetch

    # --- Lane-dense reshape: (N, 1) -> (rows, 128), padded as needed. -------
    flat = x.reshape(-1).astype(jnp.float32)
    total = flat.shape[0]
    rows = pl.cdiv(total, LANES)
    if rows >= MAX_TILE_ROWS:
        tile_rows = MAX_TILE_ROWS
    else:
        # Small input: a single tile, rounded up to the (8, 128) f32 tiling.
        tile_rows = max(SUBLANES, ((rows + SUBLANES - 1) // SUBLANES) * SUBLANES)
    padded_rows = ((rows + tile_rows - 1) // tile_rows) * tile_rows
    padded_total = padded_rows * LANES
    if padded_total != total:
        flat = jnp.pad(flat, (0, padded_total - total))
    x2d = flat.reshape(padded_rows, LANES)

    grid = (padded_rows // tile_rows,)

    out2d = pl.pallas_call(
        _linreg_composite3_kernel,
        out_shape=jax.ShapeDtypeStruct((padded_rows, LANES), jnp.float32),
        grid_spec=pltpu.PrefetchScalarGridSpec(
            num_scalar_prefetch=1,
            grid=grid,
            in_specs=[
                pl.BlockSpec((tile_rows, LANES), lambda i, params: (i, 0)),
            ],
            out_specs=pl.BlockSpec((tile_rows, LANES), lambda i, params: (i, 0)),
        ),
        compiler_params=pltpu.CompilerParams(
            dimension_semantics=("parallel",),  # shard rows across TCs on v7x
        ),
    )(params, x2d)

    # Slice off padding rows and restore the caller's (N, 1) layout / dtype.
    return out2d.reshape(-1)[:total].reshape(orig_shape).astype(orig_dtype)


if __name__ == "__main__":
    key = jax.random.PRNGKey(0)
    kx, kw = jax.random.split(key)

    # Small batch of scalar inputs, shape (8, 1) like nn.Linear(1,1) expects.
    N = 8
    x = jax.random.normal(kx, (N, 1), dtype=jnp.float32)

    # Deterministic parameter init (Linear(1,1): scalar weight + scalar bias x3).
    p = jax.random.uniform(kw, (6,), minval=-1.0, maxval=1.0, dtype=jnp.float32)
    w1, b1, w2, b2, w3, b3 = p[0], p[1], p[2], p[3], p[4], p[5]

    out = linreg_composite3(x, w1, b1, w2, b2, w3, b3)
    out = jax.block_until_ready(out)

    # Pure-JAX reference of the sequential chained affine transforms.
    ref = ((x * w1 + b1) * w2 + b2) * w3 + b3
    assert out.shape == (N, 1)
    # Folded form differs from the sequential chain only by f32 rounding order.
    assert jnp.allclose(out, ref, atol=1e-5, rtol=1e-5), (out, ref)

    print("KERNEL_OK")
</pallas_src>

<mosaic_0001>
module attributes {stable_mosaic.version = 11 : i64} {
  func.func @_linreg_composite3_kernel(%arg0: i32, %arg1: memref<2xf32, #tpu.memory_space<smem>>, %arg2: memref<8x128xf32, #tpu.memory_space<vmem>>, %arg3: memref<8x128xf32, #tpu.memory_space<vmem>>) attributes {dimension_semantics = [#tpu.dimension_semantics<parallel>], iteration_bounds = array<i64: 1>, scalar_prefetch = 1 : i64, scratch_operands = 0 : i64, tpu.core_type = #tpu.core_type<tc>, window_params = [{transform_indices = @transform_0, window_bounds = array<i64: 8, 128>}, {transform_indices = @transform_1, window_bounds = array<i64: 8, 128>}]} {
    %c0 = arith.constant 0 : index
    %0 = memref.load %arg1[%c0] : memref<2xf32, #tpu.memory_space<smem>>
    %c1 = arith.constant 1 : index
    %1 = memref.load %arg1[%c1] : memref<2xf32, #tpu.memory_space<smem>>
    %c0_0 = arith.constant 0 : index
    %c0_1 = arith.constant 0 : index
    %2 = vector.load %arg2[%c0_0, %c0_1] : memref<8x128xf32, #tpu.memory_space<vmem>>, vector<8x128xf32>
    %3 = vector.broadcast %0 : f32 to vector<8x128xf32>
    %4 = arith.mulf %2, %3 : vector<8x128xf32>
    %5 = vector.broadcast %1 : f32 to vector<8x128xf32>
    %6 = arith.addf %4, %5 : vector<8x128xf32>
    %c0_2 = arith.constant 0 : index
    %c0_3 = arith.constant 0 : index
    %7 = vector.load %arg3[%c0_2, %c0_3] : memref<8x128xf32, #tpu.memory_space<vmem>>, vector<8x128xf32>
    tpu.vector_store %arg3[%c0_2, %c0_3], %6 {strides = array<i32>} : memref<8x128xf32, #tpu.memory_space<vmem>>, vector<8x128xf32>,
    return
  }
  func.func @transform_0(%arg0: i32, %arg1: memref<2xf32, #tpu.memory_space<smem>>) -> (i32, i32) {
    %c0_i32 = arith.constant 0 : i32
    %c0_i32_0 = arith.constant 0 : i32
    return %arg0, %c0_i32 : i32, i32
  }
  func.func @transform_1(%arg0: i32, %arg1: memref<2xf32, #tpu.memory_space<smem>>) -> (i32, i32) {
    %c0_i32 = arith.constant 0 : i32
    %c0_i32_0 = arith.constant 0 : i32
    return %arg0, %c0_i32 : i32, i32
  }
}

</mosaic_0001>

<llo_original>
// kernel: tpu_custom_call.1
$region0: #{tpu_custom_call.1}
  #allocation0 [shape = 'u32[]', space=smem, size = 0x4, offset = 0x4, fixed_abs, tag = 'smem constant byte address 0x4 - core index']
  #allocation1 [shape = 'u32[144,128]{1,0:T(1,128)}', space=vmem, size = 0x12000, scoped, tag = 'internal scratch']
  #allocation2 [shape = 's32[1]{0}', space=sflag, size = 0x4, scoped, tag = 'scoped memory for tpu_custom_call.1']
  #allocation3 [shape = 'u8[512]{0}', space=smem, size = 0x200, scoped, tag = 'prefetched SMEM operand 0']
  %s0 = inlined_call_operand.hbm [shape: f32[2], index: 0, kind: input, shape index: {}]
  %s1 = inlined_call_operand.hbm [shape: f32[8,128], index: 1, kind: input, shape index: {}]
  %s2 = inlined_call_operand.hbm [shape: f32[8,128], index: 2, kind: output, shape index: {}]
  %s3 = sld [smem:[#allocation0]]
  $region18: #{tpu_custom_call.1} parent=0
    _
  %s5 = ssub.s32 1, %s3
  %s6 = scalar_select 0, %s5, %s3
  %8 = dma.hbm_to_smem %s0, 16, [#allocation3], [#allocation2]
  %9 = dma.done [#allocation2], 16
  %10 = sfence
  $region1: #{tpu_custom_call.1} parent=0
    #allocation4 [shape = 'u8[4096]{0}', space=vmem, size = 0x1000, scoped, tag = 'input window, operand 1, single buffered']
    #allocation5 [shape = 's32[1]{0}', space=sflag, size = 0x4, scoped, tag = 'scoped memory for tpu_custom_call.1']
    #allocation6 [shape = 's32[1]{0}', space=sflag, size = 0x4, scoped, tag = 'scoped memory for tpu_custom_call.1']
    #allocation7 [shape = 'u8[4096]{0}', space=vmem, size = 0x1000, scoped, tag = 'output window, operand 0, single buffered']
    %11 = vsyncpa [#allocation5], 0
    %12 = vsyncpa [#allocation6], 0
    // Predicated region
    $region2: #{tpu_custom_call.1} parent=1 // pred_check
      _
    $region3: #{tpu_custom_call.1} parent=1 // pred_check_branch
      %14 = sbr.rel (0) target = $region5
    $region4: #{tpu_custom_call.1} parent=1 // pred_region
      %s16 = ssub.s32 128, 128
      %17 = vsyncadd [#allocation5], %s16
      %s19 = sshll.u32 [#allocation4], 4
      %s20 = int_to_ptr.vmem [resolvable:$true] %s19
      %22 = dma.hbm_to_vmem [thread:$0]  %s1, 128, %s20, [#allocation5]
    $region5: #{tpu_custom_call.1} parent=1 // pred_fallthru
      _
    // Predicated region
    $region6: #{tpu_custom_call.1} parent=1 // pred_check
      _
    $region7: #{tpu_custom_call.1} parent=1 // pred_check_branch
      %24 = sbr.rel (0) target = $region9
    $region8: #{tpu_custom_call.1} parent=1 // pred_region
      %25 = dma.done [#allocation5], 128
    $region9: #{tpu_custom_call.1} parent=1 // pred_fallthru
      _
    %s26 = sld [smem:[#allocation3]]
    %s27 = sld [smem:[#allocation3 + $0x1]]
    %v28 = vld [vmem:[#allocation4] sm:$0xff]
    %v29 = vstv %s26
    %v30 = vmul.f32 %v28, %v29
    %v31 = vstv %s27
    %v32 = vadd.f32 %v30, %v31
    %33 = vst [vmem:[#allocation7] sm:$0xff] %v32
    // Predicated region
    $region10: #{tpu_custom_call.1} parent=1 // pred_check
      _
    $region11: #{tpu_custom_call.1} parent=1 // pred_check_branch
      %35 = sbr.rel (0) target = $region13
    $region12: #{tpu_custom_call.1} parent=1 // pred_region
      %s37 = ssub.s32 128, 128
      %38 = vsyncadd [#allocation6], %s37
      %s40 = sshll.u32 [#allocation7], 4
      %s41 = int_to_ptr.vmem [resolvable:$true] %s40
      %43 = dma.vmem_to_hbm [thread:$0]  %s41, 128, %s2, [#allocation6]
    $region13: #{tpu_custom_call.1} parent=1 // pred_fallthru
      _
    // Predicated region
    $region14: #{tpu_custom_call.1} parent=1 // pred_check
      _
    $region15: #{tpu_custom_call.1} parent=1 // pred_check_branch
      %45 = sbr.rel (0) target = $region17
    $region16: #{tpu_custom_call.1} parent=1 // pred_region
      %46 = dma.done [#allocation6], 128
    $region17: #{tpu_custom_call.1} parent=1 // pred_fallthru
      _
    %47 = vsyncpa [#allocation5], 1
    %48 = vsyncpa [#allocation6], 1

</llo_original>
